<compile_context>
chip_gen: v5e
topology: v5e:2x2
jax: 0.10.0
libtpu: 0.0.40
codegen_flags: <defaults>
</compile_context>

<pallas_src>
import functools
import math

import numpy as np
import jax
import jax.numpy as jnp
from jax.experimental import pallas as pl
from jax.experimental.pallas import tpu as pltpu


# ----------------------------------------------------------------------------
# small helpers
# ----------------------------------------------------------------------------
def _round_up(x, m):
    return (x + m - 1) // m * m


def _cparams(*sems):
    return pltpu.CompilerParams(
        dimension_semantics=tuple(sems),
        vmem_limit_bytes=32 * 1024 * 1024,
    )


# ----------------------------------------------------------------------------
# Pallas kernel: tiled matmul + bias (+ fused swish), bf16 MXU / f32 accumulate
# ----------------------------------------------------------------------------
def _mm_kernel(a_ref, w_ref, b_ref, o_ref, acc_ref, *, act):
    @pl.when(pl.program_id(1) == 0)
    def _():
        acc_ref[...] = jnp.zeros_like(acc_ref)

    acc_ref[...] += jnp.dot(a_ref[...], w_ref[...],
                            preferred_element_type=jnp.float32)

    @pl.when(pl.program_id(1) == pl.num_programs(1) - 1)
    def _():
        y = acc_ref[...] + b_ref[...]
        if act == "swish":
            y = y * jax.nn.sigmoid(y)
        o_ref[...] = y


def pallas_linear(a, w, b, act=None):
    """(M,K) @ (K,N) + b with optional fused swish.

    M padded to a multiple of tm, K padded + tiled (f32 accumulator), N padded to a
    lane-dense multiple of 128.  Operands are cast to bf16 for the MXU.
    """
    M, K = a.shape
    Kw, N = w.shape
    assert K == Kw
    Np = _round_up(N, 128)
    Kp = _round_up(K, 128)
    tk = 512 if Kp % 512 == 0 else (256 if Kp % 256 == 0 else 128)
    tm = min(512, _round_up(M, 8))
    Mp = _round_up(M, tm)

    ap = jnp.pad(a.astype(jnp.float32), ((0, Mp - M), (0, Kp - K))).astype(jnp.bfloat16)
    wp = jnp.pad(w.astype(jnp.float32), ((0, Kp - K), (0, Np - N))).astype(jnp.bfloat16)
    bp = jnp.pad(b.astype(jnp.float32), (0, Np - N)).reshape(1, Np)

    out = pl.pallas_call(
        functools.partial(_mm_kernel, act=act),
        out_shape=jax.ShapeDtypeStruct((Mp, Np), jnp.float32),
        grid=(Mp // tm, Kp // tk),
        in_specs=[
            pl.BlockSpec((tm, tk), lambda i, k: (i, k)),
            pl.BlockSpec((tk, Np), lambda i, k: (k, 0)),
            pl.BlockSpec((1, Np), lambda i, k: (0, 0)),
        ],
        out_specs=pl.BlockSpec((tm, Np), lambda i, k: (i, 0)),
        scratch_shapes=[pltpu.VMEM((tm, Np), jnp.float32)],
        compiler_params=_cparams("parallel", "arbitrary"),
    )(ap, wp, bp)
    return out[:M, :N]


# ----------------------------------------------------------------------------
# Pallas kernel: 3x3 conv (NHWC) as 9 shifted-slice matmuls, no im2col in HBM
# ----------------------------------------------------------------------------
def _conv3x3_kernel(x_ref, w_ref, b_ref, o_ref, *, L, W2):
    # x_ref : (1, L + 2*M0, Cin) f32  (zero-padded, flattened image + row margins)
    # w_ref : (9, Cin, Npad)     bf16
    # b_ref : (1, Npad)          f32
    # o_ref : (1, L, Npad)       f32  (padded-grid output, border stripped outside)
    M0 = W2 + 1
    npad = o_ref.shape[2]
    x = x_ref[0]                                             # (L + 2*M0, Cin)
    acc = jnp.zeros((L, npad), jnp.float32)
    for dy in range(3):
        for dx in range(3):
            off = M0 + (dy - 1) * W2 + (dx - 1)              # static shift per tap
            patch = x[off:off + L, :].astype(jnp.bfloat16)   # (L, Cin)
            acc = acc + jnp.dot(patch, w_ref[dy * 3 + dx],
                                preferred_element_type=jnp.float32)
    o_ref[0] = acc + b_ref[...]


def conv2d_3x3_nhwc(x, w9, b, stride=1):
    """x: (B,H,W,Cin) NHWC, w9: (9, Cin, Cout) [tap = dy*3+dx], b: (Cout,)."""
    B, H, W, Cin = x.shape
    Cout = w9.shape[2]
    Np = _round_up(Cout, 128)
    H2, W2 = H + 2, W + 2
    L = H2 * W2
    M0 = W2 + 1

    xp = jnp.pad(x.astype(jnp.float32), ((0, 0), (1, 1), (1, 1), (0, 0)))
    xf = xp.reshape(B, L, Cin)
    xf = jnp.pad(xf, ((0, 0), (M0, M0), (0, 0)))             # per-batch row margins
    wp = jnp.pad(w9.astype(jnp.float32), ((0, 0), (0, 0), (0, Np - Cout))).astype(jnp.bfloat16)
    bp = jnp.pad(b.astype(jnp.float32), (0, Np - Cout)).reshape(1, Np)

    out = pl.pallas_call(
        functools.partial(_conv3x3_kernel, L=L, W2=W2),
        out_shape=jax.ShapeDtypeStruct((B, L, Np), jnp.float32),
        grid=(B,),
        in_specs=[
            pl.BlockSpec((1, L + 2 * M0, Cin), lambda bb: (bb, 0, 0)),
            pl.BlockSpec((9, Cin, Np), lambda bb: (0, 0, 0)),
            pl.BlockSpec((1, Np), lambda bb: (0, 0)),
        ],
        out_specs=pl.BlockSpec((1, L, Np), lambda bb: (bb, 0, 0)),
        compiler_params=_cparams("parallel"),
    )(xf, wp, bp)

    out = out.reshape(B, H2, W2, Np)
    return out[:, 1:H + 1:stride, 1:W + 1:stride, :Cout]


def conv2d_1x1_nhwc(x, w, b):
    B, H, W, Cin = x.shape
    out = pallas_linear(x.reshape(B * H * W, Cin), w, b)
    return out.reshape(B, H, W, -1)


# ----------------------------------------------------------------------------
# Pallas kernel: GroupNorm (NHWC), one-pass stats, fused temb add / swish
# ----------------------------------------------------------------------------
def _gn_kernel(x_ref, add_ref, m_ref, mt_ref, g_ref, bt_ref, o_ref, *, eps, swish, inv_n):
    # x_ref  : (1, HW, C)   add_ref : (1, C)    m_ref : (C, G)   mt_ref : (G, C)
    x = x_ref[0] + add_ref[...]                              # (HW, C) f32
    s1 = jnp.sum(x, axis=0, keepdims=True)                   # (1, C)
    s2 = jnp.sum(x * x, axis=0, keepdims=True)               # (1, C)
    gmean = jnp.dot(s1, m_ref[...], preferred_element_type=jnp.float32) * inv_n   # (1, G)
    gmsq = jnp.dot(s2, m_ref[...], preferred_element_type=jnp.float32) * inv_n    # (1, G)
    gvar = gmsq - gmean * gmean
    ginv = jax.lax.rsqrt(gvar + eps)                         # (1, G)
    mean_c = jnp.dot(gmean, mt_ref[...], preferred_element_type=jnp.float32)      # (1, C)
    inv_c = jnp.dot(ginv, mt_ref[...], preferred_element_type=jnp.float32)        # (1, C)
    y = (x - mean_c) * (inv_c * g_ref[...]) + bt_ref[...]
    if swish:
        y = y * jax.nn.sigmoid(y)
    o_ref[0] = y


def groupnorm_nhwc(x, gamma, beta, *, swish, add=None, num_groups=32, eps=1e-5):
    B, H, W, C = x.shape
    G = num_groups
    assert C % G == 0, f"GroupNorm requires C % {G} == 0, got C={C}"
    Cg = C // G
    HW = H * W
    x3 = x.reshape(B, HW, C).astype(jnp.float32)
    if add is None:
        add = jnp.zeros((B, C), jnp.float32)
    grp = jnp.arange(C) // Cg
    m = (grp[:, None] == jnp.arange(G)[None, :]).astype(jnp.float32)   # (C, G)
    mt = m.T                                                            # (G, C)
    g2 = gamma.reshape(1, C).astype(jnp.float32)
    b2 = beta.reshape(1, C).astype(jnp.float32)

    out = pl.pallas_call(
        functools.partial(_gn_kernel, eps=eps, swish=swish, inv_n=1.0 / (Cg * HW)),
        out_shape=jax.ShapeDtypeStruct((B, HW, C), jnp.float32),
        grid=(B,),
        in_specs=[
            pl.BlockSpec((1, HW, C), lambda bb: (bb, 0, 0)),
            pl.BlockSpec((1, C), lambda bb: (bb, 0)),
            pl.BlockSpec((C, G), lambda bb: (0, 0)),
            pl.BlockSpec((G, C), lambda bb: (0, 0)),
            pl.BlockSpec((1, C), lambda bb: (0, 0)),
            pl.BlockSpec((1, C), lambda bb: (0, 0)),
        ],
        out_specs=pl.BlockSpec((1, HW, C), lambda bb: (bb, 0, 0)),
        compiler_params=_cparams("parallel"),
    )(x3, add.astype(jnp.float32), m, mt, g2, b2)
    return out.reshape(B, H, W, C)


# ----------------------------------------------------------------------------
# Pallas kernel: attention (query-block tiled, bf16 MXU operands)
# ----------------------------------------------------------------------------
def _attn_kernel(q_ref, k_ref, v_ref, o_ref):
    q = q_ref[0]                                             # (tq, Cp) bf16, pre-scaled
    k = k_ref[0]                                             # (S, Cp)  bf16
    v = v_ref[0]                                             # (S, Cp)  bf16
    s = jax.lax.dot_general(q, k, (((1,), (1,)), ((), ())),
                            preferred_element_type=jnp.float32)        # (tq, S) f32
    s = s - jnp.max(s, axis=-1, keepdims=True)
    p = jnp.exp(s)
    denom = jnp.sum(p, axis=-1, keepdims=True)
    p = p * pl.reciprocal(denom, approx=True)
    o_ref[0] = jnp.dot(p.astype(jnp.bfloat16), v,
                       preferred_element_type=jnp.float32)


def attention_pallas(q, k, v):
    B, S, Cp = q.shape
    tq = 256 if (S > 256 and S % 256 == 0) else S
    return pl.pallas_call(
        _attn_kernel,
        out_shape=jax.ShapeDtypeStruct((B, S, Cp), jnp.float32),
        grid=(B, S // tq),
        in_specs=[
            pl.BlockSpec((1, tq, Cp), lambda bb, i: (bb, i, 0)),
            pl.BlockSpec((1, S, Cp), lambda bb, i: (bb, 0, 0)),
            pl.BlockSpec((1, S, Cp), lambda bb, i: (bb, 0, 0)),
        ],
        out_specs=pl.BlockSpec((1, tq, Cp), lambda bb, i: (bb, i, 0)),
        compiler_params=_cparams("parallel", "parallel"),
    )(q, k, v)


# ----------------------------------------------------------------------------
# Pallas kernel: Rayleigh channel noise, tiled elementwise
# ----------------------------------------------------------------------------
def _rayleigh_kernel(a_ref, b_ref, o_ref):
    a = a_ref[...]
    b = b_ref[...]
    o_ref[...] = jnp.sqrt(a * a + b * b) * np.float32(1.0 / math.sqrt(2.0))


def rayleigh_pallas(n1, n2):
    shp = n1.shape
    total = 1
    for d in shp:
        total *= int(d)
    lane = 128
    rows0 = _round_up(-(-total // lane), 8)
    tr = min(rows0, 256)
    rows = _round_up(rows0, tr)
    tot_p = rows * lane
    a = jnp.pad(n1.reshape(-1).astype(jnp.float32), (0, tot_p - total)).reshape(rows, lane)
    b = jnp.pad(n2.reshape(-1).astype(jnp.float32), (0, tot_p - total)).reshape(rows, lane)
    out = pl.pallas_call(
        _rayleigh_kernel,
        out_shape=jax.ShapeDtypeStruct((rows, lane), jnp.float32),
        grid=(rows // tr,),
        in_specs=[pl.BlockSpec((tr, lane), lambda i: (i, 0)),
                  pl.BlockSpec((tr, lane), lambda i: (i, 0))],
        out_specs=pl.BlockSpec((tr, lane), lambda i: (i, 0)),
        compiler_params=_cparams("parallel"),
    )(a, b)
    return out.reshape(-1)[:total].reshape(shp)


# ----------------------------------------------------------------------------
# Parameter initialization (deterministic, synthetic)
# ----------------------------------------------------------------------------
class KeyGen:
    def __init__(self, key):
        self.key = key

    def __call__(self):
        self.key, sub = jax.random.split(self.key)
        return sub


def conv3_params(kg, cin, cout):
    w = jax.random.normal(kg(), (9, cin, cout), jnp.float32) * (1.0 / math.sqrt(cin * 9))
    b = jnp.zeros((cout,), jnp.float32)
    return w, b


def conv1_params(kg, cin, cout):
    w = jax.random.normal(kg(), (cin, cout), jnp.float32) * (1.0 / math.sqrt(cin))
    b = jnp.zeros((cout,), jnp.float32)
    return w, b


def linear_params(kg, cin, cout):
    w = jax.random.normal(kg(), (cin, cout), jnp.float32) * (1.0 / math.sqrt(cin))
    b = jnp.zeros((cout,), jnp.float32)
    return w, b


def init_unet(key, *, T, ch, ch_mult, attn, num_res_blocks, input_channel):
    kg = KeyGen(key)
    tdim = ch * 4

    # sinusoidal time-embedding table (matches pytorch-ddpm TimeEmbedding)
    d_model = ch
    emb = np.exp(-(np.arange(0, d_model, 2, dtype=np.float64) / d_model * math.log(10000)))
    pos = np.arange(T, dtype=np.float64)
    e = pos[:, None] * emb[None, :]
    table = np.stack([np.sin(e), np.cos(e)], axis=-1).reshape(T, d_model).astype(np.float32)
    te = {"table": jnp.asarray(table)}
    te["w1"], te["b1"] = linear_params(kg, ch, tdim)
    te["w2"], te["b2"] = linear_params(kg, tdim, tdim)

    head_w, head_b = conv3_params(kg, 2 * input_channel, ch)

    def make_attn(out_ch):
        cp = _round_up(out_ch, 128)
        wq, _ = conv1_params(kg, out_ch, out_ch)
        wk, _ = conv1_params(kg, out_ch, out_ch)
        wv, _ = conv1_params(kg, out_ch, out_ch)
        qkv_w = jnp.zeros((out_ch, 3 * cp), jnp.float32)
        qkv_w = qkv_w.at[:, 0:out_ch].set(wq)
        qkv_w = qkv_w.at[:, cp:cp + out_ch].set(wk)
        qkv_w = qkv_w.at[:, 2 * cp:2 * cp + out_ch].set(wv)
        qkv_b = jnp.zeros((3 * cp,), jnp.float32)
        p_w, p_b = conv1_params(kg, out_ch, out_ch)
        return {"cp": cp,
                "gn_g": jnp.ones((out_ch,), jnp.float32),
                "gn_b": jnp.zeros((out_ch,), jnp.float32),
                "qkv_w": qkv_w, "qkv_b": qkv_b, "p_w": p_w, "p_b": p_b}

    def make_res(in_ch, out_ch, use_attn):
        p = {"type": "res"}
        p["gn1_g"] = jnp.ones((in_ch,), jnp.float32)
        p["gn1_b"] = jnp.zeros((in_ch,), jnp.float32)
        p["conv1_w"], p["conv1_b"] = conv3_params(kg, in_ch, out_ch)
        p["temb_w"], p["temb_b"] = linear_params(kg, tdim, out_ch)
        p["gn2_g"] = jnp.ones((out_ch,), jnp.float32)
        p["gn2_b"] = jnp.zeros((out_ch,), jnp.float32)
        p["conv2_w"], p["conv2_b"] = conv3_params(kg, out_ch, out_ch)
        if in_ch != out_ch:
            p["short_w"], p["short_b"] = conv1_params(kg, in_ch, out_ch)
        else:
            p["short_w"], p["short_b"] = None, None
        p["attn"] = make_attn(out_ch) if use_attn else None
        return p

    down = []
    chs = [ch]
    now_ch = ch
    for i, mult in enumerate(ch_mult):
        out_ch = ch * mult
        for _ in range(num_res_blocks):
            down.append(make_res(now_ch, out_ch, i in attn))
            now_ch = out_ch
            chs.append(now_ch)
        if i != len(ch_mult) - 1:
            w, b = conv3_params(kg, now_ch, now_ch)
            down.append({"type": "down", "w": w, "b": b})
            chs.append(now_ch)

    mid = [make_res(now_ch, now_ch, True), make_res(now_ch, now_ch, False)]

    up = []
    for i, mult in reversed(list(enumerate(ch_mult))):
        out_ch = ch * mult
        for _ in range(num_res_blocks + 1):
            up.append(make_res(chs.pop() + now_ch, out_ch, i in attn))
            now_ch = out_ch
        if i != 0:
            w, b = conv3_params(kg, now_ch, now_ch)
            up.append({"type": "up", "w": w, "b": b})
    assert len(chs) == 0

    tail = {"gn_g": jnp.ones((now_ch,), jnp.float32),
            "gn_b": jnp.zeros((now_ch,), jnp.float32)}
    tail["w"], tail["b"] = conv3_params(kg, now_ch, input_channel)

    return {"te": te, "head": (head_w, head_b), "down": down, "mid": mid, "up": up, "tail": tail}


# ----------------------------------------------------------------------------
# UNet forward (NHWC activations, orchestrating the Pallas kernels)
# ----------------------------------------------------------------------------
def attn_forward(a, x):
    B, H, W, C = x.shape
    S = H * W
    Cp = a["cp"]
    hn = groupnorm_nhwc(x, a["gn_g"], a["gn_b"], swish=False)
    qkv = pallas_linear(hn.reshape(B * S, C), a["qkv_w"], a["qkv_b"])   # (B*S, 3*Cp)
    qkv = qkv.reshape(B, S, 3 * Cp)
    scale = float(C) ** (-0.5)
    q = (qkv[:, :, 0:Cp] * scale).astype(jnp.bfloat16)       # scale folded into q
    k = qkv[:, :, Cp:2 * Cp].astype(jnp.bfloat16)
    v = qkv[:, :, 2 * Cp:3 * Cp].astype(jnp.bfloat16)
    o = attention_pallas(q, k, v)                            # (B, S, Cp) f32
    o = o[:, :, :C].reshape(B * S, C)
    o = pallas_linear(o, a["p_w"], a["p_b"]).reshape(B, H, W, C)
    return x + o


def resblock_forward(p, x, temb_sw):
    h = groupnorm_nhwc(x, p["gn1_g"], p["gn1_b"], swish=True)
    h = conv2d_3x3_nhwc(h, p["conv1_w"], p["conv1_b"])
    tproj = pallas_linear(temb_sw, p["temb_w"], p["temb_b"])            # (B, out_ch)
    # temb broadcast-add fused into the second GroupNorm
    h = groupnorm_nhwc(h, p["gn2_g"], p["gn2_b"], swish=True, add=tproj)
    # TODO(synk): dropout omitted (p=0.0 in this config)
    h = conv2d_3x3_nhwc(h, p["conv2_w"], p["conv2_b"])
    if p["short_w"] is not None:
        x = conv2d_1x1_nhwc(x, p["short_w"], p["short_b"])
    h = h + x
    if p["attn"] is not None:
        h = attn_forward(p["attn"], h)
    return h


def unet_forward(params, x_nhwc, t, cond_h_nhwc):
    te = params["te"]
    temb0 = te["table"][t]                                   # (B, ch) embedding lookup
    temb = pallas_linear(temb0, te["w1"], te["b1"], act="swish")
    temb_sw = pallas_linear(temb, te["w2"], te["b2"], act="swish")   # shared Swish fused here

    # condition: concat the (noisy) channel estimate h along the channel axis (NHWC)
    xh = jnp.concatenate([x_nhwc, cond_h_nhwc], axis=-1)

    hw, hb = params["head"]
    h = conv2d_3x3_nhwc(xh, hw, hb)
    hs = [h]
    for p in params["down"]:
        if p["type"] == "res":
            h = resblock_forward(p, h, temb_sw)
        else:                                                # DownSample: conv3x3 stride 2
            h = conv2d_3x3_nhwc(h, p["w"], p["b"], stride=2)
        hs.append(h)
    for p in params["mid"]:
        h = resblock_forward(p, h, temb_sw)
    for p in params["up"]:
        if p["type"] == "res":
            h = resblock_forward(p, jnp.concatenate([h, hs.pop()], axis=-1), temb_sw)
        else:                                                # UpSample: nearest x2 + conv3x3
            h = jnp.repeat(jnp.repeat(h, 2, axis=1), 2, axis=2)
            h = conv2d_3x3_nhwc(h, p["w"], p["b"])
    assert len(hs) == 0
    tl = params["tail"]
    h = groupnorm_nhwc(h, tl["gn_g"], tl["gn_b"], swish=True)
    h = conv2d_3x3_nhwc(h, tl["w"], tl["b"])
    return h


def netcddm_forward(params, x, key):
    """Equivalent of netCDDM.forward(input) for NCHW `x`."""
    B = x.shape[0]
    k1, k2 = jax.random.split(key)
    n1 = jax.random.normal(k1, x.shape, jnp.float32)
    n2 = jax.random.normal(k2, x.shape, jnp.float32)
    h = rayleigh_pallas(n1, n2)                              # sqrt(n1^2+n2^2)/sqrt(2)
    t = jnp.full((B,), 100, dtype=jnp.int32)
    x_nhwc = jnp.transpose(x, (0, 2, 3, 1))                  # single layout change at boundary
    h_nhwc = jnp.transpose(h, (0, 2, 3, 1))
    out = unet_forward(params, x_nhwc, t, h_nhwc)
    return jnp.transpose(out, (0, 3, 1, 2))                  # back to NCHW


# ----------------------------------------------------------------------------
if __name__ == "__main__":
    key = jax.random.PRNGKey(0)
    kp, kx, kn = jax.random.split(key, 3)

    B, C, H, W = 2, 2, 16, 16
    cfg = dict(T=1000, ch=32, ch_mult=(1, 2), attn=(1,), num_res_blocks=1, input_channel=C)

    params = init_unet(kp, **cfg)
    x = jax.random.normal(kx, (B, C, H, W), jnp.float32)

    out = netcddm_forward(params, x, kn)
    out = jax.block_until_ready(out)
    assert out.shape == (B, C, H, W), out.shape
    assert bool(jnp.all(jnp.isfinite(out)))
    print("KERNEL_OK")
</pallas_src>

<mosaic_0001>
module attributes {stable_mosaic.version = 11 : i64} {
  func.func @_rayleigh_kernel(%arg0: i32, %arg1: memref<8x128xf32, #tpu.memory_space<vmem>>, %arg2: memref<8x128xf32, #tpu.memory_space<vmem>>, %arg3: memref<8x128xf32, #tpu.memory_space<vmem>>) attributes {dimension_semantics = [#tpu.dimension_semantics<parallel>], iteration_bounds = array<i64: 1>, scalar_prefetch = 0 : i64, scratch_operands = 0 : i64, tpu.core_type = #tpu.core_type<tc>, window_params = [{transform_indices = @transform_0, window_bounds = array<i64: 8, 128>}, {transform_indices = @transform_1, window_bounds = array<i64: 8, 128>}, {transform_indices = @transform_2, window_bounds = array<i64: 8, 128>}]} {
    %c0 = arith.constant 0 : index
    %c0_0 = arith.constant 0 : index
    %0 = vector.load %arg1[%c0, %c0_0] : memref<8x128xf32, #tpu.memory_space<vmem>>, vector<8x128xf32>
    %c0_1 = arith.constant 0 : index
    %c0_2 = arith.constant 0 : index
    %1 = vector.load %arg2[%c0_1, %c0_2] : memref<8x128xf32, #tpu.memory_space<vmem>>, vector<8x128xf32>
    %2 = arith.mulf %0, %0 : vector<8x128xf32>
    %3 = arith.mulf %1, %1 : vector<8x128xf32>
    %4 = arith.addf %2, %3 : vector<8x128xf32>
    %5 = math.sqrt %4 : vector<8x128xf32>
    %cst = arith.constant 0.707106769 : f32
    %6 = vector.broadcast %cst : f32 to vector<8x128xf32>
    %7 = arith.mulf %5, %6 : vector<8x128xf32>
    %c0_3 = arith.constant 0 : index
    %c0_4 = arith.constant 0 : index
    %8 = vector.load %arg3[%c0_3, %c0_4] : memref<8x128xf32, #tpu.memory_space<vmem>>, vector<8x128xf32>
    tpu.vector_store %arg3[%c0_3, %c0_4], %7 {strides = array<i32>} : memref<8x128xf32, #tpu.memory_space<vmem>>, vector<8x128xf32>,
    return
  }
  func.func @transform_0(%arg0: i32) -> (i32, i32) {
    %c0_i32 = arith.constant 0 : i32
    %c0_i32_0 = arith.constant 0 : i32
    return %arg0, %c0_i32 : i32, i32
  }
  func.func @transform_1(%arg0: i32) -> (i32, i32) {
    %c0_i32 = arith.constant 0 : i32
    %c0_i32_0 = arith.constant 0 : i32
    return %arg0, %c0_i32 : i32, i32
  }
  func.func @transform_2(%arg0: i32) -> (i32, i32) {
    %c0_i32 = arith.constant 0 : i32
    %c0_i32_0 = arith.constant 0 : i32
    return %arg0, %c0_i32 : i32, i32
  }
}

</mosaic_0001>

<llo_original>
// kernel: tpu_custom_call.1
$region0: #{tpu_custom_call.1}
  #allocation0 [shape = 'u32[]', space=smem, size = 0x4, offset = 0x4, fixed_abs, tag = 'smem constant byte address 0x4 - core index']
  #allocation1 [shape = 'u32[72,128]{1,0:T(1,128)}', space=vmem, size = 0x9000, scoped, tag = 'internal scratch']
  %s0 = inlined_call_operand.hbm [shape: f32[8,128], index: 0, kind: input, shape index: {}]
  %s1 = inlined_call_operand.hbm [shape: f32[8,128], index: 1, kind: input, shape index: {}]
  %s2 = inlined_call_operand.hbm [shape: f32[8,128], index: 2, kind: output, shape index: {}]
  %s3 = sld [smem:[#allocation0]]
  $region26: #{tpu_custom_call.1} parent=0
    _
  %s5 = ssub.s32 1, %s3
  %s6 = scalar_select 0, %s5, %s3
  $region1: #{tpu_custom_call.1} parent=0
    #allocation2 [shape = 'u8[4096]{0}', space=vmem, size = 0x1000, scoped, tag = 'input window, operand 0, single buffered']
    #allocation3 [shape = 's32[1]{0}', space=sflag, size = 0x4, scoped, tag = 'scoped memory for tpu_custom_call.1']
    #allocation4 [shape = 's32[1]{0}', space=sflag, size = 0x4, scoped, tag = 'scoped memory for tpu_custom_call.1']
    #allocation5 [shape = 'u8[4096]{0}', space=vmem, size = 0x1000, scoped, tag = 'input window, operand 1, single buffered']
    #allocation6 [shape = 's32[1]{0}', space=sflag, size = 0x4, scoped, tag = 'scoped memory for tpu_custom_call.1']
    #allocation7 [shape = 'u8[4096]{0}', space=vmem, size = 0x1000, scoped, tag = 'output window, operand 0, single buffered']
    %7 = vsyncpa [#allocation3], 0
    %8 = vsyncpa [#allocation6], 0
    %9 = vsyncpa [#allocation4], 0
    // Predicated region
    $region2: #{tpu_custom_call.1} parent=1 // pred_check
      _
    $region3: #{tpu_custom_call.1} parent=1 // pred_check_branch
      %11 = sbr.rel (0) target = $region5
    $region4: #{tpu_custom_call.1} parent=1 // pred_region
      %13 = vsyncadd [#allocation3], 0
      %s15 = sshll.u32 %s0, 4
      %s16 = int_to_ptr.hbm [resolvable:$true] %s15
      %s17 = sshll.u32 [#allocation2], 4
      %s18 = int_to_ptr.vmem [resolvable:$true] %s17
      %20 = dma.hbm_to_vmem [thread:$0]  %s16, 128, %s18, [#allocation3]
    $region5: #{tpu_custom_call.1} parent=1 // pred_fallthru
      _
    // Predicated region
    $region6: #{tpu_custom_call.1} parent=1 // pred_check
      _
    $region7: #{tpu_custom_call.1} parent=1 // pred_check_branch
      %22 = sbr.rel (0) target = $region9
    $region8: #{tpu_custom_call.1} parent=1 // pred_region
      %24 = vsyncadd [#allocation6], 0
      %s26 = sshll.u32 %s1, 4
      %s27 = int_to_ptr.hbm [resolvable:$true] %s26
      %s28 = sshll.u32 [#allocation5], 4
      %s29 = int_to_ptr.vmem [resolvable:$true] %s28
      %31 = dma.hbm_to_vmem [thread:$0]  %s27, 128, %s29, [#allocation6]
    $region9: #{tpu_custom_call.1} parent=1 // pred_fallthru
      _
    // Predicated region
    $region10: #{tpu_custom_call.1} parent=1 // pred_check
      _
    $region11: #{tpu_custom_call.1} parent=1 // pred_check_branch
      %33 = sbr.rel (0) target = $region13
    $region12: #{tpu_custom_call.1} parent=1 // pred_region
      %35 = dma.done [#allocation3], 128
    $region13: #{tpu_custom_call.1} parent=1 // pred_fallthru
      _
    // Predicated region
    $region14: #{tpu_custom_call.1} parent=1 // pred_check
      _
    $region15: #{tpu_custom_call.1} parent=1 // pred_check_branch
      %37 = sbr.rel (0) target = $region17
    $region16: #{tpu_custom_call.1} parent=1 // pred_region
      %39 = dma.done [#allocation6], 128
    $region17: #{tpu_custom_call.1} parent=1 // pred_fallthru
      _
    %v40 = vld [vmem:[#allocation2] sm:$0xff]
    %v41 = vld [vmem:[#allocation5] sm:$0xff]
    %v42 = vmul.f32 %v40, %v40
    %v43 = vmul.f32 %v41, %v41
    %v44 = vadd.f32 %v42, %v43
    %v45 = vrsqrt.pop %v44
    %v46 = vmul.f32 %v45, %v44
    %v47 = vmul.f32 %v46, %v45
    %v48 = vmul.f32 0.5, %v47
    %v49 = vsub.f32 1.5, %v48
    %v50 = vmul.f32 %v45, %v49
    %v51 = vmul.f32 %v44, %v50
    %vm52 = vcmp.eq.f32.partialorder %v44, inf
    %v53 = vsel %vm52, %v44, %v51
    %vm54 = vcmp.eq.f32.partialorder %v44, 0.0
    %v55 = vand.u32 %v44, 2147483648
    %v56 = vsel %vm54, %v55, %v53
    %v57 = vmul.f32 %v56, 0.70710677
    %58 = vst [vmem:[#allocation7] sm:$0xff] %v57
    // Predicated region
    $region18: #{tpu_custom_call.1} parent=1 // pred_check
      _
    $region19: #{tpu_custom_call.1} parent=1 // pred_check_branch
      %60 = sbr.rel (0) target = $region21
    $region20: #{tpu_custom_call.1} parent=1 // pred_region
      %62 = vsyncadd [#allocation4], 0
      %s64 = sshll.u32 [#allocation7], 4
      %s65 = int_to_ptr.vmem [resolvable:$true] %s64
      %s66 = sshll.u32 %s2, 4
      %s67 = int_to_ptr.hbm [resolvable:$true] %s66
      %69 = dma.vmem_to_hbm [thread:$0]  %s65, 128, %s67, [#allocation4]
    $region21: #{tpu_custom_call.1} parent=1 // pred_fallthru
      _
    // Predicated region
    $region22: #{tpu_custom_call.1} parent=1 // pred_check
      _
    $region23: #{tpu_custom_call.1} parent=1 // pred_check_branch
      %71 = sbr.rel (0) target = $region25
    $region24: #{tpu_custom_call.1} parent=1 // pred_region
      %73 = dma.done [#allocation4], 128
    $region25: #{tpu_custom_call.1} parent=1 // pred_fallthru
      _
    %74 = vsyncpa [#allocation3], 1
    %75 = vsyncpa [#allocation6], 1
    %76 = vsyncpa [#allocation4], 1

</llo_original>
